<compile_context>
chip_gen: v7x
topology: tpu7x:2x2x1
jax: 0.10.0
libtpu: 0.0.40
codegen_flags: <defaults>
</compile_context>

<pallas_src>
import jax
import jax.numpy as jnp
from jax.experimental import pallas as pl
from jax.experimental.pallas import tpu as pltpu


IN_DIM, H1_DIM, H2_DIM, OUT_DIM = 20, 64, 32, 16


def _round_up(n, m):
    return ((n + m - 1) // m) * m


def nest_mlp_kernel(x_ref, w1_ref, b1_ref, w2_ref, b2_ref, w3_ref, b3_ref, o_ref):
    # x / weights arrive as bf16; accumulation + bias + ReLU in f32.
    x = x_ref[...]                                                      # (tm, 20) bf16
    h1 = jnp.dot(x, w1_ref[...], preferred_element_type=jnp.float32)   # (tm, 64) f32
    h1 = jnp.maximum(h1 + b1_ref[...], 0.0).astype(jnp.bfloat16)
    h2 = jnp.dot(h1, w2_ref[...], preferred_element_type=jnp.float32)  # (tm, 32) f32
    h2 = jnp.maximum(h2 + b2_ref[...], 0.0).astype(jnp.bfloat16)
    # final layer: real 16-wide output tile (no lane padding -> no wasted HBM bytes)
    o_ref[...] = (
        jnp.dot(h2, w3_ref[...], preferred_element_type=jnp.float32) + b3_ref[...]
    )


def nest_mlp(x, w1, b1, w2, b2, w3, b3, *, block_m=4096):
    batch = x.shape[0]

    # ---- batch tiling --------------------------------------------------------
    # * multiple of 16 (bf16 sublane tile for the streamed x)
    # * capped at ~ceil(batch/2) so the grid has >=2 steps (both v7x TCs busy)
    # * capped at block_m (keeps tile VMEM small; fits v7x's 64 MiB easily)
    tm = min(block_m, max(16, _round_up((batch + 1) // 2, 16)))
    padded_batch = _round_up(batch, tm)
    if padded_batch != batch:
        x = jnp.pad(x, ((0, padded_batch - batch), (0, 0)))

    # ---- bf16 for the streamed operands (f32 accumulation in-kernel) ---------
    xb = x.astype(jnp.bfloat16)
    w1b = w1.astype(jnp.bfloat16)
    w2b = w2.astype(jnp.bfloat16)
    w3b = w3.astype(jnp.bfloat16)

    grid = (padded_batch // tm,)

    # accurate (unpadded) cost estimate
    flops = 2 * padded_batch * (IN_DIM * H1_DIM + H1_DIM * H2_DIM + H2_DIM * OUT_DIM)
    bytes_accessed = (
        padded_batch * IN_DIM * 2                                        # x stream (bf16)
        + padded_batch * OUT_DIM * 4                                     # output stream (f32)
        + (IN_DIM * H1_DIM + H1_DIM * H2_DIM + H2_DIM * OUT_DIM) * 2     # weights (bf16)
        + (H1_DIM + H2_DIM + OUT_DIM) * 4                                # biases (f32)
    )

    out = pl.pallas_call(
        nest_mlp_kernel,
        out_shape=jax.ShapeDtypeStruct((padded_batch, OUT_DIM), jnp.float32),
        grid=grid,
        in_specs=[
            pl.BlockSpec((tm, IN_DIM), lambda i: (i, 0)),       # x: streamed per tile
            pl.BlockSpec((IN_DIM, H1_DIM), lambda i: (0, 0)),   # weights/biases resident
            pl.BlockSpec((1, H1_DIM), lambda i: (0, 0)),
            pl.BlockSpec((H1_DIM, H2_DIM), lambda i: (0, 0)),
            pl.BlockSpec((1, H2_DIM), lambda i: (0, 0)),
            pl.BlockSpec((H2_DIM, OUT_DIM), lambda i: (0, 0)),
            pl.BlockSpec((1, OUT_DIM), lambda i: (0, 0)),
        ],
        out_specs=pl.BlockSpec((tm, OUT_DIM), lambda i: (i, 0)),
        compiler_params=pltpu.CompilerParams(
            dimension_semantics=("parallel",),   # megacore sharding on v7x
            vmem_limit_bytes=32 << 20,           # safe on v5e/v6e/v7x; tile uses only a few MB
        ),
        cost_estimate=pl.CostEstimate(
            flops=int(flops), transcendentals=0, bytes_accessed=int(bytes_accessed)
        ),
    )(xb, w1b, b1, w2b, b2, w3b, b3)

    # row-only slice to strip batch padding (output is already 16 wide, f32)
    return out[:batch]


def init_linear(key, fan_in, fan_out):
    # deterministic synthetic init (PyTorch-style uniform bound 1/sqrt(fan_in))
    kw, kb = jax.random.split(key)
    bound = 1.0 / jnp.sqrt(jnp.float32(fan_in))
    w = jax.random.uniform(kw, (fan_in, fan_out), jnp.float32, -bound, bound)
    b = jax.random.uniform(kb, (1, fan_out), jnp.float32, -bound, bound)
    return w, b


if __name__ == "__main__":
    key = jax.random.PRNGKey(0)
    kx, k1, k2, k3 = jax.random.split(key, 4)

    # X = torch.rand(2, 20)  -> uniform [0, 1)
    x = jax.random.uniform(kx, (2, 20), jnp.float32)

    w1, b1 = init_linear(k1, IN_DIM, H1_DIM)
    w2, b2 = init_linear(k2, H1_DIM, H2_DIM)
    w3, b3 = init_linear(k3, H2_DIM, OUT_DIM)

    out = nest_mlp(x, w1, b1, w2, b2, w3, b3)
    out = jax.block_until_ready(out)
    assert out.shape == (2, OUT_DIM)
    assert out.dtype == jnp.float32

    # reference 1: plain f32 (module semantics); loosened tolerance for the
    # bf16-streamed operands (accumulation stays f32).
    # TODO(synk): intermediates are bf16 between layers; switch streamed
    # operands to f32 if bit-accurate parity with the f32 PyTorch module is
    # required.
    ref32 = jnp.maximum(x @ w1 + b1, 0.0)
    ref32 = jnp.maximum(ref32 @ w2 + b2, 0.0)
    ref32 = ref32 @ w3 + b3
    assert jnp.allclose(out, ref32, atol=3e-2, rtol=3e-2)

    # reference 2: bf16-mirrored math (same casts as the kernel) -> tight check.
    hb = jnp.dot(x.astype(jnp.bfloat16), w1.astype(jnp.bfloat16),
                 preferred_element_type=jnp.float32)
    hb = jnp.maximum(hb + b1, 0.0).astype(jnp.bfloat16)
    hb = jnp.dot(hb, w2.astype(jnp.bfloat16), preferred_element_type=jnp.float32)
    hb = jnp.maximum(hb + b2, 0.0).astype(jnp.bfloat16)
    ref_bf16 = jnp.dot(hb, w3.astype(jnp.bfloat16),
                       preferred_element_type=jnp.float32) + b3
    assert jnp.allclose(out, ref_bf16, atol=1e-4, rtol=1e-4)

    print("KERNEL_OK")
</pallas_src>

<mosaic_0001>
module attributes {stable_mosaic.version = 11 : i64} {
  func.func @nest_mlp_kernel(%arg0: i32, %arg1: memref<16x20xbf16, #tpu.memory_space<vmem>>, %arg2: memref<20x64xbf16, #tpu.memory_space<vmem>>, %arg3: memref<1x64xf32, #tpu.memory_space<vmem>>, %arg4: memref<64x32xbf16, #tpu.memory_space<vmem>>, %arg5: memref<1x32xf32, #tpu.memory_space<vmem>>, %arg6: memref<32x16xbf16, #tpu.memory_space<vmem>>, %arg7: memref<1x16xf32, #tpu.memory_space<vmem>>, %arg8: memref<16x16xf32, #tpu.memory_space<vmem>>) attributes {dimension_semantics = [#tpu.dimension_semantics<parallel>], iteration_bounds = array<i64: 1>, scalar_prefetch = 0 : i64, scratch_operands = 0 : i64, tpu.core_type = #tpu.core_type<tc>, window_params = [{transform_indices = @transform_0, window_bounds = array<i64: 16, 20>}, {pipeline_mode = #tpu.pipeline_mode<synchronous>, transform_indices = @transform_1, window_bounds = array<i64: 20, 64>}, {pipeline_mode = #tpu.pipeline_mode<synchronous>, transform_indices = @transform_2, window_bounds = array<i64: 1, 64>}, {pipeline_mode = #tpu.pipeline_mode<synchronous>, transform_indices = @transform_3, window_bounds = array<i64: 64, 32>}, {pipeline_mode = #tpu.pipeline_mode<synchronous>, transform_indices = @transform_4, window_bounds = array<i64: 1, 32>}, {pipeline_mode = #tpu.pipeline_mode<synchronous>, transform_indices = @transform_5, window_bounds = array<i64: 32, 16>}, {pipeline_mode = #tpu.pipeline_mode<synchronous>, transform_indices = @transform_6, window_bounds = array<i64: 1, 16>}, {transform_indices = @transform_7, window_bounds = array<i64: 16, 16>}]} {
    %c0 = arith.constant 0 : index
    %c0_0 = arith.constant 0 : index
    %0 = vector.load %arg1[%c0, %c0_0] : memref<16x20xbf16, #tpu.memory_space<vmem>>, vector<16x20xbf16>
    %c0_1 = arith.constant 0 : index
    %c0_2 = arith.constant 0 : index
    %1 = vector.load %arg2[%c0_1, %c0_2] : memref<20x64xbf16, #tpu.memory_space<vmem>>, vector<20x64xbf16>
    %cst = arith.constant dense<0.000000e+00> : vector<16x64xf32>
    %2 = tpu.matmul %0, %1, %cst {dimension_numbers = #tpu.dot_dimension_numbers<[1], [0], [0], [1], [0, 0, 1, 1], [], []>} : vector<16x20xbf16>, vector<20x64xbf16>, vector<16x64xf32> -> vector<16x64xf32>
    %c0_3 = arith.constant 0 : index
    %c0_4 = arith.constant 0 : index
    %3 = vector.load %arg3[%c0_3, %c0_4] : memref<1x64xf32, #tpu.memory_space<vmem>>, vector<1x64xf32>
    %4 = vector.broadcast %3 : vector<1x64xf32> to vector<16x64xf32>
    %5 = arith.addf %2, %4 : vector<16x64xf32>
    %cst_5 = arith.constant 0.000000e+00 : f32
    %6 = vector.broadcast %cst_5 : f32 to vector<16x64xf32>
    %7 = arith.maximumf %5, %6 : vector<16x64xf32>
    %8 = arith.truncf %7 : vector<16x64xf32> to vector<16x64xbf16>
    %c0_6 = arith.constant 0 : index
    %c0_7 = arith.constant 0 : index
    %9 = vector.load %arg4[%c0_6, %c0_7] : memref<64x32xbf16, #tpu.memory_space<vmem>>, vector<64x32xbf16>
    %cst_8 = arith.constant dense<0.000000e+00> : vector<16x32xf32>
    %10 = tpu.matmul %8, %9, %cst_8 {dimension_numbers = #tpu.dot_dimension_numbers<[1], [0], [0], [1], [0, 0, 1, 1], [], []>} : vector<16x64xbf16>, vector<64x32xbf16>, vector<16x32xf32> -> vector<16x32xf32>
    %c0_9 = arith.constant 0 : index
    %c0_10 = arith.constant 0 : index
    %11 = vector.load %arg5[%c0_9, %c0_10] : memref<1x32xf32, #tpu.memory_space<vmem>>, vector<1x32xf32>
    %12 = vector.broadcast %11 : vector<1x32xf32> to vector<16x32xf32>
    %13 = arith.addf %10, %12 : vector<16x32xf32>
    %cst_11 = arith.constant 0.000000e+00 : f32
    %14 = vector.broadcast %cst_11 : f32 to vector<16x32xf32>
    %15 = arith.maximumf %13, %14 : vector<16x32xf32>
    %16 = arith.truncf %15 : vector<16x32xf32> to vector<16x32xbf16>
    %c0_12 = arith.constant 0 : index
    %c0_13 = arith.constant 0 : index
    %17 = vector.load %arg6[%c0_12, %c0_13] : memref<32x16xbf16, #tpu.memory_space<vmem>>, vector<32x16xbf16>
    %cst_14 = arith.constant dense<0.000000e+00> : vector<16x16xf32>
    %18 = tpu.matmul %16, %17, %cst_14 {dimension_numbers = #tpu.dot_dimension_numbers<[1], [0], [0], [1], [0, 0, 1, 1], [], []>} : vector<16x32xbf16>, vector<32x16xbf16>, vector<16x16xf32> -> vector<16x16xf32>
    %c0_15 = arith.constant 0 : index
    %c0_16 = arith.constant 0 : index
    %19 = vector.load %arg7[%c0_15, %c0_16] : memref<1x16xf32, #tpu.memory_space<vmem>>, vector<1x16xf32>
    %20 = vector.broadcast %19 : vector<1x16xf32> to vector<16x16xf32>
    %21 = arith.addf %18, %20 : vector<16x16xf32>
    %c0_17 = arith.constant 0 : index
    %c0_18 = arith.constant 0 : index
    %22 = vector.load %arg8[%c0_17, %c0_18] : memref<16x16xf32, #tpu.memory_space<vmem>>, vector<16x16xf32>
    tpu.vector_store %arg8[%c0_17, %c0_18], %21 {strides = array<i32>} : memref<16x16xf32, #tpu.memory_space<vmem>>, vector<16x16xf32>,
    return
  }
  func.func @transform_0(%arg0: i32) -> (i32, i32) {
    %c0_i32 = arith.constant 0 : i32
    %c0_i32_0 = arith.constant 0 : i32
    return %arg0, %c0_i32 : i32, i32
  }
  func.func @transform_1(%arg0: i32) -> (i32, i32) {
    %c0_i32 = arith.constant 0 : i32
    %c0_i32_0 = arith.constant 0 : i32
    %c0_i32_1 = arith.constant 0 : i32
    return %c0_i32, %c0_i32_0 : i32, i32
  }
  func.func @transform_2(%arg0: i32) -> (i32, i32) {
    %c0_i32 = arith.constant 0 : i32
    %c0_i32_0 = arith.constant 0 : i32
    %c0_i32_1 = arith.constant 0 : i32
    return %c0_i32, %c0_i32_0 : i32, i32
  }
  func.func @transform_3(%arg0: i32) -> (i32, i32) {
    %c0_i32 = arith.constant 0 : i32
    %c0_i32_0 = arith.constant 0 : i32
    %c0_i32_1 = arith.constant 0 : i32
    return %c0_i32, %c0_i32_0 : i32, i32
  }
  func.func @transform_4(%arg0: i32) -> (i32, i32) {
    %c0_i32 = arith.constant 0 : i32
    %c0_i32_0 = arith.constant 0 : i32
    %c0_i32_1 = arith.constant 0 : i32
    return %c0_i32, %c0_i32_0 : i32, i32
  }
  func.func @transform_5(%arg0: i32) -> (i32, i32) {
    %c0_i32 = arith.constant 0 : i32
    %c0_i32_0 = arith.constant 0 : i32
    %c0_i32_1 = arith.constant 0 : i32
    return %c0_i32, %c0_i32_0 : i32, i32
  }
  func.func @transform_6(%arg0: i32) -> (i32, i32) {
    %c0_i32 = arith.constant 0 : i32
    %c0_i32_0 = arith.constant 0 : i32
    %c0_i32_1 = arith.constant 0 : i32
    return %c0_i32, %c0_i32_0 : i32, i32
  }
  func.func @transform_7(%arg0: i32) -> (i32, i32) {
    %c0_i32 = arith.constant 0 : i32
    %c0_i32_0 = arith.constant 0 : i32
    return %arg0, %c0_i32 : i32, i32
  }
}

</mosaic_0001>

<llo_original>
// kernel: tpu_custom_call.1
$region0: #{tpu_custom_call.1}
  #allocation0 [shape = 'u32[]', space=smem, size = 0x4, offset = 0x4, fixed_abs, tag = 'smem constant byte address 0x4 - core index']
  #allocation1 [shape = 'u32[144,128]{1,0:T(1,128)}', space=vmem, size = 0x12000, scoped, tag = 'internal scratch']
  %s0 = inlined_call_operand.vmem [shape: bf16[16,20], index: 0, kind: input, shape index: {}]
  %s1 = inlined_call_operand.vmem [shape: bf16[20,64], index: 1, kind: input, shape index: {}]
  %s2 = inlined_call_operand.vmem [shape: f32[1,64], index: 2, kind: input, shape index: {}]
  %s3 = inlined_call_operand.vmem [shape: bf16[64,32], index: 3, kind: input, shape index: {}]
  %s4 = inlined_call_operand.vmem [shape: f32[1,32], index: 4, kind: input, shape index: {}]
  %s5 = inlined_call_operand.vmem [shape: bf16[32,16], index: 5, kind: input, shape index: {}]
  %s6 = inlined_call_operand.vmem [shape: f32[1,16], index: 6, kind: input, shape index: {}]
  %s7 = inlined_call_operand.hbm [shape: f32[16,16], index: 7, kind: output, shape index: {}]
  %s8 = sld [smem:[#allocation0]]
  $region38: #{tpu_custom_call.1} parent=0
    _
  %s10 = ssub.s32 1, %s8
  %s11 = scalar_select 0, %s10, %s8
  $region1: #{tpu_custom_call.1} parent=0
    #allocation2 [shape = 'u8[8192]{0}', space=vmem, size = 0x2000, scoped, tag = 'output window, operand 0, single buffered']
    #allocation3 [shape = 's32[1]{0}', space=sflag, size = 0x4, scoped, tag = 'scoped memory for tpu_custom_call.1']
    %12 = vsyncpa [#allocation3], 0
    // Predicated region
    $region2: #{tpu_custom_call.1} parent=1 // pred_check
      _
    $region3: #{tpu_custom_call.1} parent=1 // pred_check_branch
      %14 = sbr.rel (0) target = $region5
    $region4: #{tpu_custom_call.1} parent=1 // pred_region
      _
    $region5: #{tpu_custom_call.1} parent=1 // pred_fallthru
      _
    // Predicated region
    $region6: #{tpu_custom_call.1} parent=1 // pred_check
      _
    $region7: #{tpu_custom_call.1} parent=1 // pred_check_branch
      %16 = sbr.rel (0) target = $region9
    $region8: #{tpu_custom_call.1} parent=1 // pred_region
      _
    $region9: #{tpu_custom_call.1} parent=1 // pred_fallthru
      _
    // Predicated region
    $region10: #{tpu_custom_call.1} parent=1 // pred_check
      _
    $region11: #{tpu_custom_call.1} parent=1 // pred_check_branch
      %18 = sbr.rel (0) target = $region13
    $region12: #{tpu_custom_call.1} parent=1 // pred_region
      _
    $region13: #{tpu_custom_call.1} parent=1 // pred_fallthru
      _
    // Predicated region
    $region14: #{tpu_custom_call.1} parent=1 // pred_check
      _
    $region15: #{tpu_custom_call.1} parent=1 // pred_check_branch
      %20 = sbr.rel (0) target = $region17
    $region16: #{tpu_custom_call.1} parent=1 // pred_region
      _
    $region17: #{tpu_custom_call.1} parent=1 // pred_fallthru
      _
    // Predicated region
    $region18: #{tpu_custom_call.1} parent=1 // pred_check
      _
    $region19: #{tpu_custom_call.1} parent=1 // pred_check_branch
      %22 = sbr.rel (0) target = $region21
    $region20: #{tpu_custom_call.1} parent=1 // pred_region
      _
    $region21: #{tpu_custom_call.1} parent=1 // pred_fallthru
      _
    // Predicated region
    $region22: #{tpu_custom_call.1} parent=1 // pred_check
      _
    $region23: #{tpu_custom_call.1} parent=1 // pred_check_branch
      %24 = sbr.rel (0) target = $region25
    $region24: #{tpu_custom_call.1} parent=1 // pred_region
      _
    $region25: #{tpu_custom_call.1} parent=1 // pred_fallthru
      _
    // Predicated region
    $region26: #{tpu_custom_call.1} parent=1 // pred_check
      _
    $region27: #{tpu_custom_call.1} parent=1 // pred_check_branch
      %26 = sbr.rel (0) target = $region29
    $region28: #{tpu_custom_call.1} parent=1 // pred_region
      _
    $region29: #{tpu_custom_call.1} parent=1 // pred_fallthru
      _
    %v28 = vld [vmem:[%s0] sm:$0xf]
    %v29 = vld [vmem:[%s0 + $0x4] sm:$0xf]
    %v30 = vld [vmem:[%s1] sm:$0xf]
    %v31 = vld [vmem:[%s1 + $0x4] sm:$0xf]
    %v32 = vld [vmem:[%s1 + $0x8] sm:$0x3]
    %v33 = vld [vmem:[%s2] sm:$0x1]
    %v35 = vlaneseq
    %v36 = vshrl.u32 %v35, 7
    %v37 = vsub.s32 0, %v36
    %v38 = vrot.slane %v33, %v37
    %v42 = vunpack.c.l.b16 %v28
    %v43 = vunpack.c.l.b16 %v29
    %v44 = vpack.c.b16 %v43, %v42
    %v48 = vunpack.c.l.b16 %v30
    %v49 = vunpack.c.l.b16 %v31
    %v50 = vunpack.c.l.b16 %v32
    %v51 = vpack.c.b16 %v49, %v48
    %v52 = vpack.c.b16 %v50, %v50
    %vm54 = vcmask 162816
    %v56 = vsel %vm54, %v44, 0
    %vm58 = vcmask 1041408
    %v60 = vsel %vm58, %v52, 0
    %62 = vmatprep.subr.bf16.mxu0 0
    %63 = vmatpush1.bf16.msra.mxu0 %v51
    %64 = vmatprep.subr.bf16.mxu0 0
    %65 = vmatpush1.bf16.msra.mxu0 %v60
    %66 = vmatprep.subr.bf16.mxu0 0
    %67 = vmatpush1.bf16.msra.mxu0 0
    %68 = vmatprep.subr.bf16.mxu0 0
    %69 = vmatpush1.bf16.msra.mxu0 0
    %70 = vmatprep.subr.bf16.mxu0 0
    %71 = vmatpush1.bf16.msra.mxu0 0
    %72 = vmatprep.subr.bf16.mxu0 0
    %73 = vmatpush1.bf16.msra.mxu0 0
    %74 = vmatprep.subr.bf16.mxu0 0
    %75 = vmatpush1.bf16.msra.mxu0 0
    %76 = vmatprep.subr.bf16.mxu0 0
    %77 = vmatpush1.bf16.msra.mxu0 0
    %78 = vmatprep.subr.bf16.mxu0 0
    %79 = vmatpush1.bf16.msra.mxu0 0
    %80 = vmatprep.subr.bf16.mxu0 0
    %81 = vmatpush1.bf16.msra.mxu0 0
    %82 = vmatprep.subr.bf16.mxu0 0
    %83 = vmatpush1.bf16.msra.mxu0 0
    %84 = vmatprep.subr.bf16.mxu0 0
    %85 = vmatpush1.bf16.msra.mxu0 0
    %86 = vmatprep.subr.bf16.mxu0 0
    %87 = vmatpush1.bf16.msra.mxu0 0
    %88 = vmatprep.subr.bf16.mxu0 0
    %89 = vmatpush1.bf16.msra.mxu0 0
    %90 = vmatprep.subr.bf16.mxu0 0
    %91 = vmatpush1.bf16.msra.mxu0 0
    %92 = vmatprep.subr.bf16.mxu0 0
    %93 = vmatpush1.bf16.msra.mxu0 0
    %94 = vmatprep.mubr.bf16.mxu0 0
    %95 = vmatmul.mubr.bf16.gmra.mrb[0].mxu0 %v56
    %v96 = vpop.f32.mrb[0].mxu0
    %v97 = vadd.f32 %v38, %v96
    %v98 = vpop.f32.mrb[0].mxu0
    %v99 = vpop.f32.mrb[0].mxu0
    %v100 = vadd.f32 %v38, %v99
    %v101 = vpop.f32.mrb[0].mxu0
    %102 = vdwg.mxu0
    %v103 = vmax.f32 %v97, 0.0
    %v104 = vmax.f32 %v100, 0.0
    %v105 = vpack.c.bf16 %v104, %v103
    %v106 = vld [vmem:[%s3] sm:$0xf]
    %v107 = vld [vmem:[%s3 + $0x4] sm:$0xf]
    %v108 = vld [vmem:[%s3 + $0x8] sm:$0xf]
    %v109 = vld [vmem:[%s3 + $0xc] sm:$0xf]
    %v110 = vld [vmem:[%s3 + $0x10] sm:$0xf]
    %v111 = vld [vmem:[%s3 + $0x14] sm:$0xf]
    %v112 = vld [vmem:[%s3 + $0x18] sm:$0xf]
    %v113 = vld [vmem:[%s3 + $0x1c] sm:$0xf]
    %v114 = vld [vmem:[%s4] sm:$0x1]
    %v116 = vlaneseq
    %v117 = vshrl.u32 %v116, 7
    %v118 = vsub.s32 0, %v117
    %v119 = vrot.slane %v114, %v118
    %v129 = vunpack.c.l.b16 %v106
    %v130 = vunpack.c.l.b16 %v107
    %v131 = vunpack.c.l.b16 %v108
    %v132 = vunpack.c.l.b16 %v109
    %v133 = vunpack.c.l.b16 %v110
    %v134 = vunpack.c.l.b16 %v111
    %v135 = vunpack.c.l.b16 %v112
    %v136 = vunpack.c.l.b16 %v113
    %v137 = vpack.c.b16 %v130, %v129
    %v138 = vpack.c.b16 %v132, %v131
    %v139 = vpack.c.b16 %v134, %v133
    %v140 = vpack.c.b16 %v136, %v135
    %vm145 = vcmask 523264
    %v147 = vsel %vm145, %v105, 0
    %149 = vmatprep.subr.bf16.mxu0 0
    %150 = vmatpush1.bf16.msra.mxu0 %v137
    %151 = vmatprep.subr.bf16.mxu0 0
    %152 = vmatpush1.bf16.msra.mxu0 %v138
    %153 = vmatprep.subr.bf16.mxu0 0
    %154 = vmatpush1.bf16.msra.mxu0 %v139
    %155 = vmatprep.subr.bf16.mxu0 0
    %156 = vmatpush1.bf16.msra.mxu0 %v140
    %157 = vmatprep.subr.bf16.mxu0 0
    %158 = vmatpush1.bf16.msra.mxu0 0
    %159 = vmatprep.subr.bf16.mxu0 0
    %160 = vmatpush1.bf16.msra.mxu0 0
    %161 = vmatprep.subr.bf16.mxu0 0
    %162 = vmatpush1.bf16.msra.mxu0 0
    %163 = vmatprep.subr.bf16.mxu0 0
    %164 = vmatpush1.bf16.msra.mxu0 0
    %165 = vmatprep.subr.bf16.mxu0 0
    %166 = vmatpush1.bf16.msra.mxu0 0
    %167 = vmatprep.subr.bf16.mxu0 0
    %168 = vmatpush1.bf16.msra.mxu0 0
    %169 = vmatprep.subr.bf16.mxu0 0
    %170 = vmatpush1.bf16.msra.mxu0 0
    %171 = vmatprep.subr.bf16.mxu0 0
    %172 = vmatpush1.bf16.msra.mxu0 0
    %173 = vmatprep.subr.bf16.mxu0 0
    %174 = vmatpush1.bf16.msra.mxu0 0
    %175 = vmatprep.subr.bf16.mxu0 0
    %176 = vmatpush1.bf16.msra.mxu0 0
    %177 = vmatprep.subr.bf16.mxu0 0
    %178 = vmatpush1.bf16.msra.mxu0 0
    %179 = vmatprep.subr.bf16.mxu0 0
    %180 = vmatpush1.bf16.msra.mxu0 0
    %181 = vmatprep.mubr.bf16.mxu0 0
    %182 = vmatmul.mubr.bf16.gmra.mrb[0].mxu0 %v147
    %v183 = vpop.f32.mrb[0].mxu0
    %v184 = vadd.f32 %v119, %v183
    %v185 = vpop.f32.mrb[0].mxu0
    %v186 = vpop.f32.mrb[0].mxu0
    %v187 = vadd.f32 %v119, %v186
    %v188 = vpop.f32.mrb[0].mxu0
    %189 = vdwg.mxu0
    %v190 = vmax.f32 %v184, 0.0
    %v191 = vmax.f32 %v187, 0.0
    %v192 = vpack.c.bf16 %v191, %v190
    %v193 = vld [vmem:[%s5] sm:$0xf]
    %v194 = vld [vmem:[%s5 + $0x4] sm:$0xf]
    %v195 = vld [vmem:[%s5 + $0x8] sm:$0xf]
    %v196 = vld [vmem:[%s5 + $0xc] sm:$0xf]
    %v197 = vld [vmem:[%s6] sm:$0x1]
    %v199 = vlaneseq
    %v200 = vshrl.u32 %v199, 7
    %v201 = vsub.s32 0, %v200
    %v202 = vrot.slane %v197, %v201
    %v208 = vunpack.c.l.b16 %v193
    %v209 = vunpack.c.l.b16 %v194
    %v210 = vunpack.c.l.b16 %v195
    %v211 = vunpack.c.l.b16 %v196
    %v212 = vpack.c.b16 %v209, %v208
    %v213 = vpack.c.b16 %v211, %v210
    %vm216 = vcmask 261120
    %v218 = vsel %vm216, %v192, 0
    %220 = vmatprep.subr.bf16.mxu0 0
    %221 = vmatpush1.bf16.msra.mxu0 %v212
    %222 = vmatprep.subr.bf16.mxu0 0
    %223 = vmatpush1.bf16.msra.mxu0 %v213
    %224 = vmatprep.subr.bf16.mxu0 0
    %225 = vmatpush1.bf16.msra.mxu0 0
    %226 = vmatprep.subr.bf16.mxu0 0
    %227 = vmatpush1.bf16.msra.mxu0 0
    %228 = vmatprep.subr.bf16.mxu0 0
    %229 = vmatpush1.bf16.msra.mxu0 0
    %230 = vmatprep.subr.bf16.mxu0 0
    %231 = vmatpush1.bf16.msra.mxu0 0
    %232 = vmatprep.subr.bf16.mxu0 0
    %233 = vmatpush1.bf16.msra.mxu0 0
    %234 = vmatprep.subr.bf16.mxu0 0
    %235 = vmatpush1.bf16.msra.mxu0 0
    %236 = vmatprep.subr.bf16.mxu0 0
    %237 = vmatpush1.bf16.msra.mxu0 0
    %238 = vmatprep.subr.bf16.mxu0 0
    %239 = vmatpush1.bf16.msra.mxu0 0
    %240 = vmatprep.subr.bf16.mxu0 0
    %241 = vmatpush1.bf16.msra.mxu0 0
    %242 = vmatprep.subr.bf16.mxu0 0
    %243 = vmatpush1.bf16.msra.mxu0 0
    %244 = vmatprep.subr.bf16.mxu0 0
    %245 = vmatpush1.bf16.msra.mxu0 0
    %246 = vmatprep.subr.bf16.mxu0 0
    %247 = vmatpush1.bf16.msra.mxu0 0
    %248 = vmatprep.subr.bf16.mxu0 0
    %249 = vmatpush1.bf16.msra.mxu0 0
    %250 = vmatprep.subr.bf16.mxu0 0
    %251 = vmatpush1.bf16.msra.mxu0 0
    %252 = vmatprep.mubr.bf16.mxu0 0
    %253 = vmatmul.mubr.bf16.gmra.mrb[0].mxu0 %v218
    %v254 = vpop.f32.mrb[0].mxu0
    %v255 = vadd.f32 %v202, %v254
    %v256 = vpop.f32.mrb[0].mxu0
    %v257 = vpop.f32.mrb[0].mxu0
    %v258 = vadd.f32 %v202, %v257
    %v259 = vpop.f32.mrb[0].mxu0
    %260 = vdwg.mxu0
    %vm261 = vcmask 130048
    %262 = vst.msk [vmem:[#allocation2] sm:$0xff] %vm261, %v255
    %263 = vst.msk [vmem:[#allocation2 + $0x8] sm:$0xff] %vm261, %v258
    // Predicated region
    $region30: #{tpu_custom_call.1} parent=1 // pred_check
      _
    $region31: #{tpu_custom_call.1} parent=1 // pred_check_branch
      %265 = sbr.rel (0) target = $region33
    $region32: #{tpu_custom_call.1} parent=1 // pred_region
      %s267 = ssub.s32 256, 256
      %268 = vsyncadd [#allocation3], %s267
      %s269 = sshll.u32 [#allocation2], 4
      %s270 = int_to_ptr.vmem [resolvable:$true] %s269
      %275 = dma.vmem_to_hbm [thread:$0]  %s270, 256, %s7, [#allocation3], 128, 128, 8
    $region33: #{tpu_custom_call.1} parent=1 // pred_fallthru
      _
    // Predicated region
    $region34: #{tpu_custom_call.1} parent=1 // pred_check
      _
    $region35: #{tpu_custom_call.1} parent=1 // pred_check_branch
      %277 = sbr.rel (0) target = $region37
    $region36: #{tpu_custom_call.1} parent=1 // pred_region
      %278 = dma.done [#allocation3], 256
    $region37: #{tpu_custom_call.1} parent=1 // pred_fallthru
      _
    %279 = vsyncpa [#allocation3], 1

</llo_original>
